<compile_context>
chip_gen: v7x
topology: tpu7x:2x2x1
jax: 0.10.0
libtpu: 0.0.40
codegen_flags: <defaults>
</compile_context>

<pallas_src>
import functools

import jax
import jax.numpy as jnp
from jax.experimental import pallas as pl
from jax.experimental.pallas import tpu as pltpu


def _round_up(a, b):
    return ((a + b - 1) // b) * b


def _focal_loss_kernel(x_ref, t_ref, out_ref, *, num_classes, gamma, chunk_rows,
                       num_chunks):
    # x_ref:   (1, C, tile_r, lanes)      logits block (input dtype; upcast per chunk)
    # t_ref:   (1, tile_r, lanes)         integer targets block (-1 in padded region)
    # out_ref: (1, 1, chunk_rows, lanes)  f32 partial-loss accumulator (resident over j)
    lanes = out_ref.shape[-1]
    j = pl.program_id(2)

    @pl.when(j == 0)
    def _():
        out_ref[...] = jnp.zeros_like(out_ref)

    def chunk_body(r, acc):
        idx = r * chunk_rows
        if not isinstance(idx, int):
            idx = pl.multiple_of(idx, chunk_rows)

        t = t_ref[0, pl.ds(idx, chunk_rows), :].astype(jnp.int32)   # (chunk_rows, lanes)

        # Pass 1: running max over the (small, static) class axis — unrolled on the VPU.
        m = x_ref[0, 0, pl.ds(idx, chunk_rows), :].astype(jnp.float32)
        for cc in range(1, num_classes):
            m = jnp.maximum(m, x_ref[0, cc, pl.ds(idx, chunk_rows), :].astype(jnp.float32))

        # Pass 2: sum of exp + gather of the shifted logit at the target class via select.
        sumexp = jnp.zeros_like(m)
        s_t = jnp.zeros_like(m)
        for cc in range(num_classes):
            sc = x_ref[0, cc, pl.ds(idx, chunk_rows), :].astype(jnp.float32) - m
            sumexp = sumexp + jnp.exp(sc)
            s_t = jnp.where(t == cc, sc, s_t)

        logpt = s_t - jnp.log(sumexp)          # log p_t (exact)
        pt = jnp.exp(logpt)                    # p_t; exp(x<=0) <= 1 in f32, no clamp needed
        w = 1.0 - pt

        if float(gamma) == float(int(gamma)) and int(gamma) >= 0:
            g = int(gamma)
            if g == 0:
                wg = jnp.ones_like(w)
            else:
                wg = w
                for _ in range(g - 1):         # gamma=2 -> one extra VPU multiply
                    wg = wg * w
        else:
            wg = w ** gamma                    # non-integer gamma fallback

        loss = -wg * logpt                     # (chunk_rows, lanes)

        # -1 padding (and any out-of-range target) is dropped from the loss sum.
        valid = (t >= 0) & (t < num_classes)
        return acc + jnp.where(valid, loss, 0.0)

    acc = jnp.zeros((chunk_rows, lanes), jnp.float32)
    if num_chunks <= 8:
        for r in range(num_chunks):            # short static unroll
            acc = chunk_body(r, acc)
    else:
        acc = jax.lax.fori_loop(0, num_chunks, chunk_body, acc)

    out_ref[0, 0] = out_ref[0, 0] + acc


def focal_loss(logits, target, *, gamma=2.0, size_average=True,
               target_step_bytes=1 << 20):
    """Focal loss matching the PyTorch module's forward (alpha=None).

    logits: (N, C, *spatial) float array (f32 / bf16 passed through, upcast in-kernel).
    target: (N, *spatial) signed-int array (int32/int16/int8 passed through).
    """
    n, c = int(logits.shape[0]), int(logits.shape[1])
    s = 1
    for d in logits.shape[2:]:
        s *= int(d)

    x = logits.reshape(n, c, s)                       # native layout: free reshapes only
    t = target.reshape(n, s)
    if (not jnp.issubdtype(t.dtype, jnp.signedinteger)) or t.dtype.itemsize > 4:
        t = t.astype(jnp.int32)                       # need -1 sentinel + <=32-bit ints

    x_bytes = int(x.dtype.itemsize)
    t_bytes = int(t.dtype.itemsize)
    bytes_per_px = c * x_bytes + t_bytes

    # Sublane granularity: 8 rows for 32-bit, 16 for 16-bit, 32 for 8-bit dtypes.
    def _sub(b):
        return 8 * max(1, 4 // b)
    chunk_rows = max(_sub(x_bytes), _sub(t_bytes))

    # Lane width: ~4K px per chunk (keeps the f32 working set inside the vreg file),
    # lane-dense (multiple of 128), and no wider than the row-split spatial extent so
    # small inputs don't over-pad.
    lanes = max(128, ((4096 // chunk_rows) // 128) * 128)
    lanes = max(128, min(lanes, _round_up(pl.cdiv(s, chunk_rows), 128)))
    # Very large C: shrink lanes so even a minimum-height double-buffered block stays
    # well inside v7x's 64 MiB VMEM.
    while lanes > 128 and 2 * chunk_rows * lanes * bytes_per_px > (12 << 20):
        lanes -= 128

    rows_needed = pl.cdiv(s, lanes)

    # Rows per grid step: ~target_step_bytes of input per step, VMEM-capped, and never
    # more than the input actually needs.
    tile_r = max(chunk_rows,
                 (target_step_bytes // (lanes * bytes_per_px)) // chunk_rows * chunk_rows)
    rows_vmem_cap = max(chunk_rows,
                        ((12 << 20) // (2 * lanes * bytes_per_px)) // chunk_rows * chunk_rows)
    tile_r = min(tile_r, rows_vmem_cap, _round_up(rows_needed, chunk_rows))

    tiles_total = pl.cdiv(rows_needed, tile_r)
    # Second *parallel* spatial axis so both v7x TensorCores run even when N == 1.
    num_par = 2 if tiles_total >= 2 else 1
    tiles_total = _round_up(tiles_total, num_par)
    tiles_per_chunk = tiles_total // num_par
    rows_pad = tiles_total * tile_r
    s_pad = rows_pad * lanes

    if s_pad != s:
        x = jnp.pad(x, ((0, 0), (0, 0), (0, s_pad - s)))
        t = jnp.pad(t, ((0, 0), (0, s_pad - s)), constant_values=-1)

    x = x.reshape(n, c, rows_pad, lanes)              # free split of the minor axis
    t = t.reshape(n, rows_pad, lanes)

    num_chunks = tile_r // chunk_rows
    block_bytes = tile_r * lanes * bytes_per_px
    vmem_limit = int(min(56 << 20, max(32 << 20, 4 * block_bytes)))

    grid = (n, num_par, tiles_per_chunk)              # (parallel, parallel, reduction)

    partial = pl.pallas_call(
        functools.partial(
            _focal_loss_kernel,
            num_classes=c, gamma=float(gamma),
            chunk_rows=chunk_rows, num_chunks=num_chunks,
        ),
        out_shape=jax.ShapeDtypeStruct((n, num_par, chunk_rows, lanes), jnp.float32),
        grid_spec=pltpu.PrefetchScalarGridSpec(
            num_scalar_prefetch=0,
            grid=grid,
            in_specs=[
                pl.BlockSpec((1, c, tile_r, lanes),
                             lambda i, p, j: (i, 0, p * tiles_per_chunk + j, 0)),
                pl.BlockSpec((1, tile_r, lanes),
                             lambda i, p, j: (i, p * tiles_per_chunk + j, 0)),
            ],
            out_specs=pl.BlockSpec((1, 1, chunk_rows, lanes),
                                   lambda i, p, j: (i, p, 0, 0)),
        ),
        compiler_params=pltpu.CompilerParams(
            dimension_semantics=("parallel", "parallel", "arbitrary"),
            vmem_limit_bytes=vmem_limit,
        ),
    )(x, t)

    loss_sum = jnp.sum(partial)                       # tiny final reduce in XLA
    if size_average:
        return loss_sum / jnp.float32(n * s)
    return loss_sum


def _focal_loss_ref(logits, target, gamma=2.0, size_average=True):
    n, c = logits.shape[0], logits.shape[1]
    x = logits.reshape(n, c, -1)
    x = jnp.moveaxis(x, 1, 2).reshape(-1, c).astype(jnp.float32)
    t = target.reshape(-1).astype(jnp.int32)
    logp = jax.nn.log_softmax(x, axis=-1)
    logpt = jnp.take_along_axis(logp, t[:, None], axis=1)[:, 0]
    pt = jnp.exp(logpt)
    loss = -((1.0 - pt) ** gamma) * logpt
    return jnp.mean(loss) if size_average else jnp.sum(loss)


if __name__ == "__main__":
    key = jax.random.PRNGKey(0)
    k1, k2, k3, k4 = jax.random.split(key, 4)

    # Config 1: the module's typical small shape (exercises padding/masking: 256 -> 1024).
    N, C, H, W = 2, 4, 16, 16
    logits = jax.random.normal(k1, (N, C, H, W), dtype=jnp.float32)
    target = jax.random.randint(k2, (N, H, W), 0, C, dtype=jnp.int32)

    out = jax.block_until_ready(focal_loss(logits, target, gamma=2.0, size_average=True))
    ref = jax.block_until_ready(_focal_loss_ref(logits, target, gamma=2.0))
    assert jnp.allclose(out, ref, rtol=1e-4, atol=1e-6), (out, ref)

    # Config 2: ragged spatial size and odd class count.
    N2, C2, H2, W2 = 1, 3, 7, 9
    logits2 = jax.random.normal(k3, (N2, C2, H2, W2), dtype=jnp.float32)
    target2 = jax.random.randint(k4, (N2, H2, W2), 0, C2, dtype=jnp.int32)

    out2 = jax.block_until_ready(focal_loss(logits2, target2, gamma=2.0, size_average=True))
    ref2 = jax.block_until_ready(_focal_loss_ref(logits2, target2, gamma=2.0))
    assert jnp.allclose(out2, ref2, rtol=1e-4, atol=1e-6), (out2, ref2)

    print("KERNEL_OK")
</pallas_src>

<mosaic_0001>
module attributes {stable_mosaic.version = 11 : i64} {
  func.func @_focal_loss_kernel(%arg0: i32, %arg1: i32, %arg2: i32, %arg3: memref<1x4x8x128xf32, #tpu.memory_space<vmem>>, %arg4: memref<1x8x128xi32, #tpu.memory_space<vmem>>, %arg5: memref<1x1x8x128xf32, #tpu.memory_space<vmem>>) attributes {dimension_semantics = [#tpu.dimension_semantics<parallel>, #tpu.dimension_semantics<parallel>, #tpu.dimension_semantics<arbitrary>], iteration_bounds = array<i64: 2, 1, 1>, scalar_prefetch = 0 : i64, scratch_operands = 0 : i64, tpu.core_type = #tpu.core_type<tc>, window_params = [{transform_indices = @transform_0, window_bounds = array<i64: 1, 4, 8, 128>}, {transform_indices = @transform_1, window_bounds = array<i64: 1, 8, 128>}, {transform_indices = @transform_2, window_bounds = array<i64: 1, 1, 8, 128>}]} {
    %c0_i32 = arith.constant 0 : i32
    %0 = arith.cmpi eq, %arg2, %c0_i32 : i32
    %1 = arith.extui %0 : i1 to i32
    %c0_i32_0 = arith.constant 0 : i32
    %2 = arith.cmpi ne, %1, %c0_i32_0 : i32
    scf.if %2 {
      %cst_47 = arith.constant 0.000000e+00 : f32
      %74 = vector.broadcast %cst_47 : f32 to vector<1x1x8x128xf32>
      %c0_48 = arith.constant 0 : index
      %c0_49 = arith.constant 0 : index
      %c0_50 = arith.constant 0 : index
      %c0_51 = arith.constant 0 : index
      %75 = vector.load %arg5[%c0_48, %c0_49, %c0_50, %c0_51] : memref<1x1x8x128xf32, #tpu.memory_space<vmem>>, vector<1x1x8x128xf32>
      tpu.vector_store %arg5[%c0_48, %c0_49, %c0_50, %c0_51], %74 {strides = array<i32>} : memref<1x1x8x128xf32, #tpu.memory_space<vmem>>, vector<1x1x8x128xf32>,
    } else {
    }
    %cst = arith.constant 0.000000e+00 : f32
    %3 = vector.broadcast %cst : f32 to vector<8x128xf32>
    %c0 = arith.constant 0 : index
    %c0_1 = arith.constant 0 : index
    %c0_2 = arith.constant 0 : index
    %4 = vector.load %arg4[%c0, %c0_1, %c0_2] : memref<1x8x128xi32, #tpu.memory_space<vmem>>, vector<1x8x128xi32>
    %5 = vector.shape_cast %4 : vector<1x8x128xi32> to vector<8x128xi32>
    %c0_3 = arith.constant 0 : index
    %c0_4 = arith.constant 0 : index
    %c0_5 = arith.constant 0 : index
    %c0_6 = arith.constant 0 : index
    %6 = vector.load %arg3[%c0_3, %c0_4, %c0_5, %c0_6] : memref<1x4x8x128xf32, #tpu.memory_space<vmem>>, vector<1x1x8x128xf32>
    %7 = vector.shape_cast %6 : vector<1x1x8x128xf32> to vector<8x128xf32>
    %c0_7 = arith.constant 0 : index
    %c1 = arith.constant 1 : index
    %c0_8 = arith.constant 0 : index
    %c0_9 = arith.constant 0 : index
    %8 = vector.load %arg3[%c0_7, %c1, %c0_8, %c0_9] : memref<1x4x8x128xf32, #tpu.memory_space<vmem>>, vector<1x1x8x128xf32>
    %9 = vector.shape_cast %8 : vector<1x1x8x128xf32> to vector<8x128xf32>
    %10 = arith.maximumf %7, %9 : vector<8x128xf32>
    %c0_10 = arith.constant 0 : index
    %c2 = arith.constant 2 : index
    %c0_11 = arith.constant 0 : index
    %c0_12 = arith.constant 0 : index
    %11 = vector.load %arg3[%c0_10, %c2, %c0_11, %c0_12] : memref<1x4x8x128xf32, #tpu.memory_space<vmem>>, vector<1x1x8x128xf32>
    %12 = vector.shape_cast %11 : vector<1x1x8x128xf32> to vector<8x128xf32>
    %13 = arith.maximumf %10, %12 : vector<8x128xf32>
    %c0_13 = arith.constant 0 : index
    %c3 = arith.constant 3 : index
    %c0_14 = arith.constant 0 : index
    %c0_15 = arith.constant 0 : index
    %14 = vector.load %arg3[%c0_13, %c3, %c0_14, %c0_15] : memref<1x4x8x128xf32, #tpu.memory_space<vmem>>, vector<1x1x8x128xf32>
    %15 = vector.shape_cast %14 : vector<1x1x8x128xf32> to vector<8x128xf32>
    %16 = arith.maximumf %13, %15 : vector<8x128xf32>
    %cst_16 = arith.constant 0.000000e+00 : f32
    %17 = vector.broadcast %cst_16 : f32 to vector<8x128xf32>
    %cst_17 = arith.constant 0.000000e+00 : f32
    %18 = vector.broadcast %cst_17 : f32 to vector<8x128xf32>
    %c0_18 = arith.constant 0 : index
    %c0_19 = arith.constant 0 : index
    %c0_20 = arith.constant 0 : index
    %c0_21 = arith.constant 0 : index
    %19 = vector.load %arg3[%c0_18, %c0_19, %c0_20, %c0_21] : memref<1x4x8x128xf32, #tpu.memory_space<vmem>>, vector<1x1x8x128xf32>
    %20 = vector.shape_cast %19 : vector<1x1x8x128xf32> to vector<8x128xf32>
    %21 = arith.subf %20, %16 : vector<8x128xf32>
    %22 = math.exp %21 : vector<8x128xf32>
    %23 = arith.addf %17, %22 : vector<8x128xf32>
    %c0_i32_22 = arith.constant 0 : i32
    %24 = vector.broadcast %c0_i32_22 : i32 to vector<8x128xi32>
    %25 = arith.cmpi eq, %5, %24 : vector<8x128xi32>
    %26 = arith.select %25, %21, %18 : vector<8x128xi1>, vector<8x128xf32>
    %c0_23 = arith.constant 0 : index
    %c1_24 = arith.constant 1 : index
    %c0_25 = arith.constant 0 : index
    %c0_26 = arith.constant 0 : index
    %27 = vector.load %arg3[%c0_23, %c1_24, %c0_25, %c0_26] : memref<1x4x8x128xf32, #tpu.memory_space<vmem>>, vector<1x1x8x128xf32>
    %28 = vector.shape_cast %27 : vector<1x1x8x128xf32> to vector<8x128xf32>
    %29 = arith.subf %28, %16 : vector<8x128xf32>
    %30 = math.exp %29 : vector<8x128xf32>
    %31 = arith.addf %23, %30 : vector<8x128xf32>
    %c1_i32 = arith.constant 1 : i32
    %32 = vector.broadcast %c1_i32 : i32 to vector<8x128xi32>
    %33 = arith.cmpi eq, %5, %32 : vector<8x128xi32>
    %34 = arith.select %33, %29, %26 : vector<8x128xi1>, vector<8x128xf32>
    %c0_27 = arith.constant 0 : index
    %c2_28 = arith.constant 2 : index
    %c0_29 = arith.constant 0 : index
    %c0_30 = arith.constant 0 : index
    %35 = vector.load %arg3[%c0_27, %c2_28, %c0_29, %c0_30] : memref<1x4x8x128xf32, #tpu.memory_space<vmem>>, vector<1x1x8x128xf32>
    %36 = vector.shape_cast %35 : vector<1x1x8x128xf32> to vector<8x128xf32>
    %37 = arith.subf %36, %16 : vector<8x128xf32>
    %38 = math.exp %37 : vector<8x128xf32>
    %39 = arith.addf %31, %38 : vector<8x128xf32>
    %c2_i32 = arith.constant 2 : i32
    %40 = vector.broadcast %c2_i32 : i32 to vector<8x128xi32>
    %41 = arith.cmpi eq, %5, %40 : vector<8x128xi32>
    %42 = arith.select %41, %37, %34 : vector<8x128xi1>, vector<8x128xf32>
    %c0_31 = arith.constant 0 : index
    %c3_32 = arith.constant 3 : index
    %c0_33 = arith.constant 0 : index
    %c0_34 = arith.constant 0 : index
    %43 = vector.load %arg3[%c0_31, %c3_32, %c0_33, %c0_34] : memref<1x4x8x128xf32, #tpu.memory_space<vmem>>, vector<1x1x8x128xf32>
    %44 = vector.shape_cast %43 : vector<1x1x8x128xf32> to vector<8x128xf32>
    %45 = arith.subf %44, %16 : vector<8x128xf32>
    %46 = math.exp %45 : vector<8x128xf32>
    %47 = arith.addf %39, %46 : vector<8x128xf32>
    %c3_i32 = arith.constant 3 : i32
    %48 = vector.broadcast %c3_i32 : i32 to vector<8x128xi32>
    %49 = arith.cmpi eq, %5, %48 : vector<8x128xi32>
    %50 = arith.select %49, %45, %42 : vector<8x128xi1>, vector<8x128xf32>
    %51 = math.log %47 : vector<8x128xf32>
    %52 = arith.subf %50, %51 : vector<8x128xf32>
    %53 = math.exp %52 : vector<8x128xf32>
    %cst_35 = arith.constant 1.000000e+00 : f32
    %54 = vector.broadcast %cst_35 : f32 to vector<8x128xf32>
    %55 = arith.subf %54, %53 : vector<8x128xf32>
    %56 = arith.mulf %55, %55 : vector<8x128xf32>
    %cst_36 = arith.constant 0.000000e+00 : f32
    %57 = vector.broadcast %cst_36 : f32 to vector<8x128xf32>
    %58 = arith.subf %57, %56 : vector<8x128xf32>
    %59 = arith.mulf %58, %52 : vector<8x128xf32>
    %c0_i32_37 = arith.constant 0 : i32
    %60 = vector.broadcast %c0_i32_37 : i32 to vector<8x128xi32>
    %61 = arith.cmpi sge, %5, %60 : vector<8x128xi32>
    %c4_i32 = arith.constant 4 : i32
    %62 = vector.broadcast %c4_i32 : i32 to vector<8x128xi32>
    %63 = arith.cmpi slt, %5, %62 : vector<8x128xi32>
    %64 = arith.andi %61, %63 : vector<8x128xi1>
    %cst_38 = arith.constant 0.000000e+00 : f32
    %65 = vector.broadcast %cst_38 : f32 to vector<8x128xf32>
    %66 = arith.select %64, %59, %65 : vector<8x128xi1>, vector<8x128xf32>
    %67 = arith.addf %3, %66 : vector<8x128xf32>
    %c0_39 = arith.constant 0 : index
    %c0_40 = arith.constant 0 : index
    %c0_41 = arith.constant 0 : index
    %c0_42 = arith.constant 0 : index
    %68 = vector.load %arg5[%c0_39, %c0_40, %c0_41, %c0_42] : memref<1x1x8x128xf32, #tpu.memory_space<vmem>>, vector<1x1x8x128xf32>
    %69 = vector.shape_cast %68 : vector<1x1x8x128xf32> to vector<8x128xf32>
    %70 = arith.addf %69, %67 : vector<8x128xf32>
    %c0_43 = arith.constant 0 : index
    %c0_44 = arith.constant 0 : index
    %c0_45 = arith.constant 0 : index
    %c0_46 = arith.constant 0 : index
    %71 = vector.load %arg5[%c0_43, %c0_44, %c0_45, %c0_46] : memref<1x1x8x128xf32, #tpu.memory_space<vmem>>, vector<1x1x8x128xf32>
    %72 = vector.shape_cast %71 : vector<1x1x8x128xf32> to vector<8x128xf32>
    %73 = vector.shape_cast %70 : vector<8x128xf32> to vector<1x1x8x128xf32>
    tpu.vector_store %arg5[%c0_43, %c0_44, %c0_45, %c0_46], %73 {strides = array<i32>} : memref<1x1x8x128xf32, #tpu.memory_space<vmem>>, vector<1x1x8x128xf32>,
    return
  }
  func.func @transform_0(%arg0: i32, %arg1: i32, %arg2: i32) -> (i32, i32, i32, i32) {
    %c1_i32 = arith.constant 1 : i32
    %0 = arith.muli %arg1, %c1_i32 : i32
    %1 = arith.addi %0, %arg2 : i32
    %c0_i32 = arith.constant 0 : i32
    %c0_i32_0 = arith.constant 0 : i32
    %c0_i32_1 = arith.constant 0 : i32
    return %arg0, %c0_i32, %1, %c0_i32_0 : i32, i32, i32, i32
  }
  func.func @transform_1(%arg0: i32, %arg1: i32, %arg2: i32) -> (i32, i32, i32) {
    %c1_i32 = arith.constant 1 : i32
    %0 = arith.muli %arg1, %c1_i32 : i32
    %1 = arith.addi %0, %arg2 : i32
    %c0_i32 = arith.constant 0 : i32
    %c0_i32_0 = arith.constant 0 : i32
    return %arg0, %1, %c0_i32 : i32, i32, i32
  }
  func.func @transform_2(%arg0: i32, %arg1: i32, %arg2: i32) -> (i32, i32, i32, i32) {
    %c0_i32 = arith.constant 0 : i32
    %c0_i32_0 = arith.constant 0 : i32
    %c0_i32_1 = arith.constant 0 : i32
    return %arg0, %arg1, %c0_i32, %c0_i32_0 : i32, i32, i32, i32
  }
}

</mosaic_0001>

<llo_original>
// kernel: tpu_custom_call.1
$region0: #{tpu_custom_call.1}
  #allocation0 [shape = 'u32[]', space=smem, size = 0x4, offset = 0x4, fixed_abs, tag = 'smem constant byte address 0x4 - core index']
  #allocation1 [shape = 'u32[144,128]{1,0:T(1,128)}', space=vmem, size = 0x12000, scoped, tag = 'internal scratch']
  %s0 = inlined_call_operand.hbm [shape: f32[2,4,8,128], index: 0, kind: input, shape index: {}]
  %s1 = inlined_call_operand.hbm [shape: s32[2,8,128], index: 1, kind: input, shape index: {}]
  %s2 = inlined_call_operand.hbm [shape: f32[2,1,8,128], index: 2, kind: output, shape index: {}]
  %s3 = sld [smem:[#allocation0]]
  $region53: #{tpu_custom_call.1} parent=0
    _
  %s5 = ssub.s32 1, %s3
  %s6 = scalar_select 0, %s5, %s3
  $region1: #{tpu_custom_call.1} parent=0
    #allocation2 [shape = 'u8[32768]{0}', space=vmem, size = 0x8000, scoped, tag = 'input window, operand 0']
    #allocation3 [shape = 's32[2]{0}', space=sflag, size = 0x8, scoped, tag = 'scoped memory for tpu_custom_call.1']
    #allocation4 [shape = 's32[2]{0}', space=sflag, size = 0x8, scoped, tag = 'scoped memory for tpu_custom_call.1']
    #allocation5 [shape = 'u8[8192]{0}', space=vmem, size = 0x2000, scoped, tag = 'input window, operand 1']
    #allocation6 [shape = 's32[2]{0}', space=sflag, size = 0x8, scoped, tag = 'scoped memory for tpu_custom_call.1']
    #allocation7 [shape = 'u8[8192]{0}', space=vmem, size = 0x2000, scoped, tag = 'output window, operand 0']
    %7 = vsyncpa [#allocation3], 0
    %s8 = scalar_lea.sflag [#allocation3], 1
    %9 = vsyncpa %s8, 0
    %10 = vsyncpa [#allocation6], 0
    %s11 = scalar_lea.sflag [#allocation6], 1
    %12 = vsyncpa %s11, 0
    %13 = vsyncpa [#allocation4], 0
    %s14 = scalar_lea.sflag [#allocation4], 1
    %15 = vsyncpa %s14, 0
    loop: start=0, step=1, limit=4
    $region2: #{tpu_custom_call.1} parent=1 // loop_pre_header
      _
    $region3: #{tpu_custom_call.1} parent=1 // loop_header
      %s17 = sphi 0, %s21
      %p18 = scmp.ge.s32.totalorder %s17, 4
      %s24 = sphi 0, %s43
      %s25 = sphi 0, %s39
      %s26 = sphi 0, %s35
      %s27 = sphi 0, %s24
      %s28 = sphi 0, %s25
      %s29 = sphi 0, %s26
      %s30 = sphi 0, %s27
      %s31 = sphi 0, %s28
      %s32 = sphi 0, %s29
      %s50 = sphi 0, %s52
      %s53 = sphi 0, %s50
      %s54 = sphi 0, %s53
      %s70 = sphi 0, %s54
      %s80 = sphi 0, %s82
      %s83 = sphi 0, %s80
      %s84 = sphi 0, %s83
      %s100 = sphi 0, %s84
      %s108 = sphi 0, %s110
      %s111 = sphi 0, %s108
      %s112 = sphi 0, %s111
      %s128 = sphi 0, %s112
    $region4: #{tpu_custom_call.1} parent=1 // loop_header_branch
      %20 = sbr.rel (%p18) target = $region8
    $region5: #{tpu_custom_call.1} parent=1 // loop_body
      %s22 = ssub.s32 %s17, 1
      %s23 = ssub.s32 %s17, 2
      %s33 = sadd.s32 1, %s26
      %p34 = scmp.ge.s32.totalorder %s33, 1
      %s35 = scalar_select %p34, 0, %s33
      %s36 = sadd.s32 1, %s25
      %s37 = scalar_select %p34, %s36, %s25
      %p38 = scmp.ge.s32.totalorder %s37, 1
      %s39 = scalar_select %p38, 0, %s37
      %s40 = sadd.s32 1, %s24
      %s41 = scalar_select %p38, %s40, %s24
      %p42 = scmp.ge.s32.totalorder %s41, 2
      %s43 = scalar_select %p42, 0, %s41
      %s44 = sadd.s32 %s25, %s26
      %s45 = sadd.s32 %s39, %s35
      %s46 = ssub.s32 %s24, %s43
      %s47 = ssub.s32 %s44, %s45
      %s48 = sor.u32 %s46, %s47
      %p49 = scmp.eq.s32.totalorder %s48, 0
      %s51 = sadd.s32 %s50, 1
      %s52 = scalar_select %p49, %s50, %s51
      %p55 = pneg %p49
      %p56 = scmp.eq.s32.totalorder %s17, 1
      %p57 = por %p55, %p56
      %p58 = scmp.ne.s32.totalorder %s50, %s53
      %p59 = scmp.eq.s32.totalorder %s17, 0
      %p60 = por %p58, %p59
      %p61 = scmp.ne.s32.totalorder %s50, %s53
      %p62 = scmp.eq.s32.totalorder %s22, 1
      %p63 = por %p61, %p62
      %p64 = scmp.ne.s32.totalorder %s53, %s54
      %p65 = scmp.eq.s32.totalorder %s22, 0
      %p66 = por %p64, %p65
      %p67 = scmp.ne.s32.totalorder %s53, %s54
      %p68 = scmp.eq.s32.totalorder %s23, 1
      %p69 = por %p67, %p68
      %p71 = scmp.ne.s32.totalorder %s54, %s70
      %p72 = scmp.eq.s32.totalorder %s23, 0
      %p73 = por %p71, %p72
      %s74 = sadd.s32 %s25, %s26
      %s75 = sadd.s32 %s39, %s35
      %s76 = ssub.s32 %s24, %s43
      %s77 = ssub.s32 %s74, %s75
      %s78 = sor.u32 %s76, %s77
      %p79 = scmp.eq.s32.totalorder %s78, 0
      %s81 = sadd.s32 %s80, 1
      %s82 = scalar_select %p79, %s80, %s81
      %p85 = pneg %p79
      %p86 = scmp.eq.s32.totalorder %s17, 1
      %p87 = por %p85, %p86
      %p88 = scmp.ne.s32.totalorder %s80, %s83
      %p89 = scmp.eq.s32.totalorder %s17, 0
      %p90 = por %p88, %p89
      %p91 = scmp.ne.s32.totalorder %s80, %s83
      %p92 = scmp.eq.s32.totalorder %s22, 1
      %p93 = por %p91, %p92
      %p94 = scmp.ne.s32.totalorder %s83, %s84
      %p95 = scmp.eq.s32.totalorder %s22, 0
      %p96 = por %p94, %p95
      %p97 = scmp.ne.s32.totalorder %s83, %s84
      %p98 = scmp.eq.s32.totalorder %s23, 1
      %p99 = por %p97, %p98
      %p101 = scmp.ne.s32.totalorder %s84, %s100
      %p102 = scmp.eq.s32.totalorder %s23, 0
      %p103 = por %p101, %p102
      %s104 = ssub.s32 %s24, %s43
      %s105 = ssub.s32 %s25, %s39
      %s106 = sor.u32 %s104, %s105
      %p107 = scmp.eq.s32.totalorder %s106, 0
      %s109 = sadd.s32 %s108, 1
      %s110 = scalar_select %p107, %s108, %s109
      %p113 = pneg %p107
      %p114 = scmp.eq.s32.totalorder %s17, 1
      %p115 = por %p113, %p114
      %p116 = scmp.ne.s32.totalorder %s108, %s111
      %p117 = scmp.eq.s32.totalorder %s17, 0
      %p118 = por %p116, %p117
      %p119 = scmp.ne.s32.totalorder %s108, %s111
      %p120 = scmp.eq.s32.totalorder %s22, 1
      %p121 = por %p119, %p120
      %p122 = scmp.ne.s32.totalorder %s111, %s112
      %p123 = scmp.eq.s32.totalorder %s22, 0
      %p124 = por %p122, %p123
      %p125 = scmp.ne.s32.totalorder %s111, %s112
      %p126 = scmp.eq.s32.totalorder %s23, 1
      %p127 = por %p125, %p126
      %p129 = scmp.ne.s32.totalorder %s112, %s128
      %p130 = scmp.eq.s32.totalorder %s23, 0
      %p131 = por %p129, %p130
      %p132 = scmp.le.s32.totalorder 1, %s17
      %p133 = scmp.lt.s32.totalorder %s17, 3
      %p134 = pnand %p132, %p133
      %p135 = pneg %p134
      // Predicated region
      $region9: #{tpu_custom_call.1} parent=5 // pred_check
        _
      $region10: #{tpu_custom_call.1} parent=5 // pred_check_branch
        %137 = sbr.rel (%p134) target = $region12
      $region11: #{tpu_custom_call.1} parent=5 // pred_region
        %s138 = ssub.s32 %s17, 1
      $region12: #{tpu_custom_call.1} parent=5 // pred_fallthru
        _
      %p139 = scmp.lt.s32.totalorder %s17, 2
      // Predicated region
      $region13: #{tpu_custom_call.1} parent=5 // pred_check
        %p140 = pneg %p139
      $region14: #{tpu_custom_call.1} parent=5 // pred_check_branch
        %142 = sbr.rel (%p140) target = $region16
      $region15: #{tpu_custom_call.1} parent=5 // pred_region
        // Predicated region
        $region17: #{tpu_custom_call.1} parent=15 // pred_check
          %p143 = pneg %p60
        $region18: #{tpu_custom_call.1} parent=15 // pred_check_branch
          %145 = sbr.rel (%p143) target = $region20
        $region19: #{tpu_custom_call.1} parent=15 // pred_region
          %s146 = sand.u32 %s50, 1
          %s147 = scalar_lea.sflag [#allocation3], %s146
          %s148 = sand.u32 %s50, 1
          %s149 = smul.addr %s148, 32
          %s150 = scalar_lea.vmem [#allocation2], %s149
          %s151 = sadd.s32 %s25, %s26
          %s153 = ssub.s32 512, 512
          %154 = vsyncadd %s147, %s153
          %s155 = smul.addr %s24, 4
          %s156 = sadd.s32 %s151, %s155
          %s157 = smul.addr %s156, 128
          %s158 = scalar_lea.hbm %s0, %s157
          %s159 = sshll.u32 %s150, 4
          %s160 = int_to_ptr.vmem [resolvable:$true] %s159
          %165 = dma.hbm_to_vmem [thread:$0]  %s158, 512, %s160, %s147, 128, 128, 8
        $region20: #{tpu_custom_call.1} parent=15 // pred_fallthru
          _
        // Predicated region
        $region21: #{tpu_custom_call.1} parent=15 // pred_check
          %p166 = pneg %p90
        $region22: #{tpu_custom_call.1} parent=15 // pred_check_branch
          %168 = sbr.rel (%p166) target = $region24
        $region23: #{tpu_custom_call.1} parent=15 // pred_region
          %s169 = sand.u32 %s80, 1
          %s170 = scalar_lea.sflag [#allocation6], %s169
          %s171 = sand.u32 %s80, 1
          %s172 = smul.addr %s171, 8
          %s173 = scalar_lea.vmem [#allocation5], %s172
          %s174 = sadd.s32 %s25, %s26
          %s176 = ssub.s32 128, 128
          %177 = vsyncadd %s170, %s176
          %s178 = sadd.s32 %s174, %s24
          %s179 = smul.addr %s178, 128
          %s180 = scalar_lea.hbm %s1, %s179
          %s182 = sshll.u32 %s173, 4
          %s183 = int_to_ptr.vmem [resolvable:$true] %s182
          %185 = dma.hbm_to_vmem [thread:$0]  %s180, 128, %s183, %s170
        $region24: #{tpu_custom_call.1} parent=15 // pred_fallthru
          _
      $region16: #{tpu_custom_call.1} parent=5 // pred_fallthru
        _
      %p186 = scmp.le.s32.totalorder 1, %s17
      %p187 = scmp.lt.s32.totalorder %s17, 3
      %p188 = pnand %p186, %p187
      %p189 = pneg %p188
      // Predicated region
      $region25: #{tpu_custom_call.1} parent=5 // pred_check
        _
      $region26: #{tpu_custom_call.1} parent=5 // pred_check_branch
        %191 = sbr.rel (%p188) target = $region28
      $region27: #{tpu_custom_call.1} parent=5 // pred_region
        %s192 = ssub.s32 %s17, 1
        %s193 = sand.u32 %s53, 1
        %s194 = scalar_lea.sflag [#allocation3], %s193
        %s195 = sand.u32 %s53, 1
        %s196 = smul.addr %s195, 32
        %s197 = scalar_lea.vmem [#allocation2], %s196
        // Predicated region
        $region29: #{tpu_custom_call.1} parent=27 // pred_check
          %p198 = pneg %p66
        $region30: #{tpu_custom_call.1} parent=27 // pred_check_branch
          %200 = sbr.rel (%p198) target = $region32
        $region31: #{tpu_custom_call.1} parent=27 // pred_region
          %201 = dma.done %s194, 512
        $region32: #{tpu_custom_call.1} parent=27 // pred_fallthru
          _
        %s202 = sand.u32 %s83, 1
        %s203 = scalar_lea.sflag [#allocation6], %s202
        %s204 = sand.u32 %s83, 1
        %s205 = smul.addr %s204, 8
        %s206 = scalar_lea.vmem [#allocation5], %s205
        // Predicated region
        $region33: #{tpu_custom_call.1} parent=27 // pred_check
          %p207 = pneg %p96
        $region34: #{tpu_custom_call.1} parent=27 // pred_check_branch
          %209 = sbr.rel (%p207) target = $region36
        $region35: #{tpu_custom_call.1} parent=27 // pred_region
          %210 = dma.done %s203, 128
        $region36: #{tpu_custom_call.1} parent=27 // pred_fallthru
          _
        %s211 = sand.u32 %s53, 1
        %s212 = scalar_lea.sflag [#allocation3], %s211
        %s213 = sand.u32 %s53, 1
        %s214 = smul.addr %s213, 32
        %s215 = scalar_lea.vmem [#allocation2], %s214
        %p216 = pneg %p66
        %p217 = pneg %p63
        %s218 = sand.u32 %s83, 1
        %s219 = scalar_lea.sflag [#allocation6], %s218
        %s220 = sand.u32 %s83, 1
        %s221 = smul.addr %s220, 8
        %s222 = scalar_lea.vmem [#allocation5], %s221
        %p223 = pneg %p96
        %p224 = pneg %p93
        %p225 = pneg %p124
        %p226 = pneg %p121
        %s227 = sand.u32 %s111, 1
        %s228 = scalar_lea.sflag [#allocation4], %s227
        %s229 = sand.u32 %s111, 1
        %s230 = smul.addr %s229, 8
        %s231 = scalar_lea.vmem [#allocation7], %s230
        %s232 = sadd.s32 %s28, %s29
        %s233 = sadd.s32 %s28, %s29
        %p234 = scmp.eq.s32.totalorder %s29, 0
        // Predicated region
        $region37: #{tpu_custom_call.1} parent=27 // pred_check
          %p235 = pneg %p234
        $region38: #{tpu_custom_call.1} parent=27 // pred_check_branch
          %237 = sbr.rel (%p235) target = $region40
        $region39: #{tpu_custom_call.1} parent=27 // pred_region
          %238 = vst [vmem:[%s231] sm:$0xff] 0.0
        $region40: #{tpu_custom_call.1} parent=27 // pred_fallthru
          _
        %v239 = vld [vmem:[%s206] sm:$0xff]
        %v240 = vld [vmem:[%s197] sm:$0xff]
        %s241 = scalar_lea.vmem %s197, 8 [#allocation2]
        %v242 = vld [vmem:[%s241] sm:$0xff]
        %v243 = vmax.f32 %v240, %v242
        %s244 = scalar_lea.vmem %s197, 16 [#allocation2]
        %v245 = vld [vmem:[%s244] sm:$0xff]
        %v246 = vmax.f32 %v243, %v245
        %s247 = scalar_lea.vmem %s197, 24 [#allocation2]
        %v248 = vld [vmem:[%s247] sm:$0xff]
        %v249 = vmax.f32 %v246, %v248
        %v250 = vsub.f32 %v240, %v249
        %v251 = vmul.f32 %v250, 1.442695
        %v252 = vpow.pop %v251
        %v253 = vadd.f32 %v252, 0.0
        %vm254 = vcmp.eq.s32.totalorder %v239, 0
        %v255 = vsel %vm254, %v250, 0.0
        %v256 = vsub.f32 %v242, %v249
        %v257 = vmul.f32 %v256, 1.442695
        %v258 = vpow.pop %v257
        %v259 = vadd.f32 %v253, %v258
        %vm260 = vcmp.eq.s32.totalorder %v239, 1
        %v261 = vsel %vm260, %v256, %v255
        %v262 = vsub.f32 %v245, %v249
        %v263 = vmul.f32 %v262, 1.442695
        %v264 = vpow.pop %v263
        %v265 = vadd.f32 %v259, %v264
        %vm266 = vcmp.eq.s32.totalorder %v239, 2
        %v267 = vsel %vm266, %v262, %v261
        %v268 = vsub.f32 %v248, %v249
        %v269 = vmul.f32 %v268, 1.442695
        %v270 = vpow.pop %v269
        %v271 = vadd.f32 %v265, %v270
        %vm272 = vcmp.eq.s32.totalorder %v239, 3
        %v273 = vsel %vm272, %v268, %v267
        %v274 = vlog2.pop %v271
        %v275 = vmul.f32 %v274, 0.6931472
        %v276 = vsub.f32 %v273, %v275
        %v277 = vmul.f32 %v276, 1.442695
        %v278 = vpow.pop %v277
        %v279 = vsub.f32 1.0, %v278
        %v280 = vmul.f32 %v279, %v279
        %v281 = vsub.f32 0.0, %v280
        %v282 = vmul.f32 %v281, %v276
        %vm283 = vcmp.ge.s32.totalorder %v239, 0
        %vm284 = vcmp.lt.s32.totalorder %v239, 4
        %vm285 = vmand %vm283, %vm284
        %v286 = vsel %vm285, %v282, 0.0
        %v287 = vadd.f32 %v286, 0.0
        %v288 = vld [vmem:[%s231] sm:$0xff]
        %v289 = vadd.f32 %v288, %v287
        %290 = vst [vmem:[%s231] sm:$0xff] %v289
        %s291 = sand.u32 %s111, 1
        %s292 = scalar_lea.sflag [#allocation4], %s291
        %s293 = sand.u32 %s111, 1
        %s294 = smul.addr %s293, 8
        %s295 = scalar_lea.vmem [#allocation7], %s294
        // Predicated region
        $region41: #{tpu_custom_call.1} parent=27 // pred_check
          %p296 = pneg %p121
        $region42: #{tpu_custom_call.1} parent=27 // pred_check_branch
          %298 = sbr.rel (%p296) target = $region44
        $region43: #{tpu_custom_call.1} parent=27 // pred_region
          %s300 = ssub.s32 128, 128
          %301 = vsyncadd %s292, %s300
          %s302 = sadd.s32 %s28, %s27
          %s303 = smul.addr %s302, 128
          %s304 = scalar_lea.hbm %s2, %s303
          %s306 = sshll.u32 %s295, 4
          %s307 = int_to_ptr.vmem [resolvable:$true] %s306
          %309 = dma.vmem_to_hbm [thread:$0]  %s307, 128, %s304, %s292
        $region44: #{tpu_custom_call.1} parent=27 // pred_fallthru
          _
      $region28: #{tpu_custom_call.1} parent=5 // pred_fallthru
        _
      %p310 = scmp.le.s32.totalorder 2, %s17
      // Predicated region
      $region45: #{tpu_custom_call.1} parent=5 // pred_check
        %p311 = pneg %p310
      $region46: #{tpu_custom_call.1} parent=5 // pred_check_branch
        %313 = sbr.rel (%p311) target = $region48
      $region47: #{tpu_custom_call.1} parent=5 // pred_region
        %s314 = ssub.s32 %s17, 2
        // Predicated region
        $region49: #{tpu_custom_call.1} parent=47 // pred_check
          %p315 = pneg %p127
        $region50: #{tpu_custom_call.1} parent=47 // pred_check_branch
          %317 = sbr.rel (%p315) target = $region52
        $region51: #{tpu_custom_call.1} parent=47 // pred_region
          %s318 = sand.u32 %s112, 1
          %s319 = scalar_lea.sflag [#allocation4], %s318
          %s320 = sand.u32 %s112, 1
          %s321 = smul.addr %s320, 8
          %s322 = scalar_lea.vmem [#allocation7], %s321
          %323 = dma.done %s319, 128
        $region52: #{tpu_custom_call.1} parent=47 // pred_fallthru
          _
      $region48: #{tpu_custom_call.1} parent=5 // pred_fallthru
        _
    $region6: #{tpu_custom_call.1} parent=1 // loop_footer
      %s21 = sadd.s32 1, %s17
    $region7: #{tpu_custom_call.1} parent=1 // loop_footer_branch
      %16 = sbr.rel target = $region3
    $region8: #{tpu_custom_call.1} parent=1 // loop_exit
      _
    %324 = vsyncpa [#allocation3], 1
    %s325 = scalar_lea.sflag [#allocation3], 1
    %326 = vsyncpa %s325, 1
    %327 = vsyncpa [#allocation6], 1
    %s328 = scalar_lea.sflag [#allocation6], 1
    %329 = vsyncpa %s328, 1
    %330 = vsyncpa [#allocation4], 1
    %s331 = scalar_lea.sflag [#allocation4], 1
    %332 = vsyncpa %s331, 1

</llo_original>
